<compile_context>
chip_gen: v7x
topology: tpu7x:2x2x1
jax: 0.10.0
libtpu: 0.0.40
codegen_flags: <defaults>
</compile_context>

<pallas_src>
import functools

import jax
import jax.numpy as jnp
from jax.experimental import pallas as pl
from jax.experimental.pallas import tpu as pltpu

# --- hyperparameters (stand-ins for `args`) ---
N_NODES = 32
INPUT_DIM = 16
HIDDEN1_DIM = 32           # must equal 2 * HIDDEN2_DIM (gcn_mean applied twice)
HIDDEN2_DIM = 16
ALPHA = 0.7
DELTA = 0.3

_NUM_LAYERS = 3            # base_gcn (relu) + gcn_mean (mish) applied twice
_VMEM_LIMIT = 48 * 1024 * 1024   # below every chip's physical VMEM (v7x: 64 MiB)


def _mish(v):
    # mish(x) = x * tanh(softplus(x)); stable softplus = max(x,0)+log1p(exp(-|x|))
    sp = jnp.maximum(v, 0.0) + jnp.log1p(jnp.exp(-jnp.abs(v)))
    return v * jnp.tanh(sp)


def _gae_encoder_kernel(x_ref, adj_ref, w_ref, m_ref, z_ref,
                        hw_ref, act_a, act_b, *, tile_n):
    """Grid = (layer l, row-block i).  Per step: rows of act(adj @ (act_in @ W_l))."""
    l = pl.program_id(0)                       # 0: relu layer, 1/2: mish layers
    i = pl.program_id(1)                       # row block of adj / output
    row0 = pl.multiple_of(i * tile_n, tile_n)

    # Once per layer (first row block): hw = act_in @ W_l over all N rows.
    # Static ref selection per layer keeps everything a plain pl.when.
    @pl.when(i == 0)
    def _():
        w = w_ref[0]

        @pl.when(l == 0)
        def _():
            hw_ref[...] = jnp.dot(
                x_ref[...], w, preferred_element_type=jnp.float32
            ).astype(hw_ref.dtype)

        @pl.when(l == 1)
        def _():
            hw_ref[...] = jnp.dot(
                act_a[...], w, preferred_element_type=jnp.float32
            ).astype(hw_ref.dtype)

        @pl.when(l == 2)
        def _():
            hw_ref[...] = jnp.dot(
                act_b[...], w, preferred_element_type=jnp.float32
            ).astype(hw_ref.dtype)

    # The big MXU op for this row block: adj[block, :] @ hw  -> (tile_n, FPAD).
    v = jnp.dot(adj_ref[...], hw_ref[...], preferred_element_type=jnp.float32)

    @pl.when(l == 0)
    def _():
        act_a[pl.ds(row0, tile_n), :] = jnp.maximum(v, 0.0).astype(act_a.dtype)

    @pl.when(l == 1)
    def _():
        act_b[pl.ds(row0, tile_n), :] = _mish(v).astype(act_b.dtype)

    @pl.when(l == 2)
    def _():
        # Final layer: mish, then alpha/delta mix of the two lane-packed
        # branches via one small matmul (result lane-dense, padded with zeros).
        z_blk = _mish(v)
        z_ref[...] = jnp.dot(z_blk, m_ref[...], preferred_element_type=jnp.float32)


def _gae_decoder_kernel(zrow_ref, zfull_ref, o_ref):
    """A_pred[block, :] = sigmoid(Z[block] @ Z^T), without materializing Z^T."""
    logits = jax.lax.dot_general(
        zrow_ref[...], zfull_ref[...],
        dimension_numbers=(((1,), (1,)), ((), ())),
        preferred_element_type=jnp.float32)
    # sigmoid(x) = 0.5 * (tanh(x / 2) + 1): single EUP transcendental/elem.
    o_ref[...] = 0.5 * jnp.tanh(0.5 * logits) + 0.5


def gae_forward(X, reorder_X, adj_ori, adj_reorder, W0, W1,
                alpha=ALPHA, delta=DELTA, *, tile_n=None, use_bf16=False):
    # Reference semantics: both branches use the adjacency captured at init.
    del adj_reorder

    n, d = X.shape
    h1 = W0.shape[1]
    h2c = W1.shape[1]                      # = 2 * hidden2
    assert W1.shape[0] == h1, "W1 input dim must be hidden1"
    assert h1 == h2c, "gcn_mean is applied twice => hidden1 == 2*hidden2 required"
    assert n % 8 == 0, "pad node count to a multiple of 8"  # TODO(synk): row padding

    # Lane-pad the packed (real | reorder) feature slab to a multiple of 128.
    fpad = max(128, -(-2 * max(d, h1, h2c) // 128) * 128)

    if tile_n is None:
        tile_n = n if n <= 256 else 256
    assert n % tile_n == 0 and (tile_n % 8 == 0 or tile_n == n)
    nb = n // tile_n

    cdt = jnp.bfloat16 if use_bf16 else jnp.float32   # MXU-operand dtype

    # ---- host-side packing: fuse the two branches on the lane axis ----------
    xp = jnp.zeros((n, fpad), jnp.float32)
    xp = xp.at[:, :d].set(X).at[:, d:2 * d].set(reorder_X)

    def block_diag(w):
        din, dout = w.shape
        wp = jnp.zeros((fpad, fpad), jnp.float32)
        wp = wp.at[:din, :dout].set(w)
        return wp.at[din:2 * din, dout:2 * dout].set(w)

    w_stack = jnp.stack([block_diag(W0), block_diag(W1), block_diag(W1)])

    eye = jnp.eye(h2c, dtype=jnp.float32)
    mix = jnp.zeros((fpad, fpad), jnp.float32)
    mix = mix.at[:h2c, :h2c].set(alpha * eye)
    mix = mix.at[h2c:2 * h2c, :h2c].set(delta * eye)

    xp = xp.astype(cdt)
    adj_c = adj_ori.astype(cdt)
    w_stack = w_stack.astype(cdt)

    # ---- encoder: grid (layer, row-block); adj streamed, activations resident
    z = pl.pallas_call(
        functools.partial(_gae_encoder_kernel, tile_n=tile_n),
        out_shape=jax.ShapeDtypeStruct((n, fpad), jnp.float32),
        grid_spec=pltpu.PrefetchScalarGridSpec(
            num_scalar_prefetch=0,
            grid=(_NUM_LAYERS, nb),
            in_specs=[
                pl.BlockSpec((n, fpad), lambda l, i: (0, 0)),          # packed X (resident)
                pl.BlockSpec((tile_n, n), lambda l, i: (i, 0)),        # adj row block (streamed)
                pl.BlockSpec((1, fpad, fpad), lambda l, i: (l, 0, 0)),  # per-layer weight
                pl.BlockSpec((fpad, fpad), lambda l, i: (0, 0)),       # alpha/delta mix (resident)
            ],
            out_specs=pl.BlockSpec((tile_n, fpad), lambda l, i: (i, 0)),
            scratch_shapes=[
                pltpu.VMEM((n, fpad), cdt),   # hw  = act_in @ W_l  (per layer)
                pltpu.VMEM((n, fpad), cdt),   # activations after layer 0 (relu)
                pltpu.VMEM((n, fpad), cdt),   # activations after layer 1 (mish)
            ],
        ),
        # Row blocks within a layer share the hw/activation scratch written at
        # i == 0, so the row axis must stay on one core ("arbitrary"); the
        # layer axis is sequential by construction.
        compiler_params=pltpu.CompilerParams(
            dimension_semantics=("arbitrary", "arbitrary"),
            vmem_limit_bytes=_VMEM_LIMIT),
    )(xp, adj_c, w_stack, mix)

    z_dec = z.astype(cdt)

    # ---- decoder: sigmoid(Z Z^T), row blocks independent -> "parallel" ------
    a_pred = pl.pallas_call(
        _gae_decoder_kernel,
        out_shape=jax.ShapeDtypeStruct((n, n), jnp.float32),
        grid_spec=pltpu.PrefetchScalarGridSpec(
            num_scalar_prefetch=0,
            grid=(nb,),
            in_specs=[
                pl.BlockSpec((tile_n, fpad), lambda i: (i, 0)),  # Z row block
                pl.BlockSpec((n, fpad), lambda i: (0, 0)),       # full Z (resident)
            ],
            out_specs=pl.BlockSpec((tile_n, n), lambda i: (i, 0)),
        ),
        compiler_params=pltpu.CompilerParams(
            dimension_semantics=("parallel",),
            vmem_limit_bytes=_VMEM_LIMIT),
    )(z_dec, z_dec)

    return a_pred


def glorot_init(key, input_dim, output_dim):
    init_range = jnp.sqrt(6.0 / (input_dim + output_dim))
    return jax.random.uniform(
        key, (input_dim, output_dim), dtype=jnp.float32,
        minval=-init_range, maxval=init_range)


if __name__ == "__main__":
    key = jax.random.PRNGKey(0)
    k_x, k_xr, k_adj, k_w0, k_w1 = jax.random.split(key, 5)

    N, D, H1, H2 = N_NODES, INPUT_DIM, HIDDEN1_DIM, HIDDEN2_DIM
    X = jax.random.normal(k_x, (N, D), dtype=jnp.float32)
    reorder_X = jax.random.normal(k_xr, (N, D), dtype=jnp.float32)

    # deterministic symmetric "normalized adjacency"
    A = jax.random.uniform(k_adj, (N, N), dtype=jnp.float32)
    A = 0.5 * (A + A.T) + jnp.eye(N, dtype=jnp.float32)
    d_inv_sqrt = 1.0 / jnp.sqrt(jnp.sum(A, axis=1))
    adj = A * d_inv_sqrt[:, None] * d_inv_sqrt[None, :]

    W0 = glorot_init(k_w0, D, H1)
    W1 = glorot_init(k_w1, H1, 2 * H2)
    # gcn_guess weights exist in __init__ but are unused in forward()  # TODO(synk): unused param

    # f32 path (tile_n=8 -> 4 row blocks, exercises streaming/pipelining).
    A_pred = gae_forward(X, reorder_X, adj, adj, W0, W1, tile_n=8)
    jax.block_until_ready(A_pred)

    # pure-JAX reference
    def ref_mish(v):
        return v * jnp.tanh(jnp.logaddexp(v, 0.0))

    def ref_gcn(x, w, act):
        return act(adj @ (x @ w))

    def ref_encode(x):
        h = ref_gcn(x, W0, lambda v: jnp.maximum(v, 0.0))
        z = ref_gcn(h, W1, ref_mish)
        return ref_gcn(z, W1, ref_mish)

    Z = ALPHA * ref_encode(X) + DELTA * ref_encode(reorder_X)
    A_ref = jax.nn.sigmoid(Z @ Z.T)

    assert A_pred.shape == (N, N)
    assert jnp.allclose(A_pred, A_ref, atol=1e-4), "f32 kernel mismatch vs reference"

    # bf16 MXU-operand path (v6e/v7x optimization) with relaxed tolerance.
    A_bf16 = gae_forward(X, reorder_X, adj, adj, W0, W1, tile_n=8, use_bf16=True)
    jax.block_until_ready(A_bf16)
    assert jnp.allclose(A_bf16, A_ref, atol=5e-2), "bf16 kernel mismatch vs reference"

    print("KERNEL_OK")
</pallas_src>

<mosaic_0001>
module attributes {stable_mosaic.version = 11 : i64} {
  func.func @_gae_encoder_kernel(%arg0: i32, %arg1: i32, %arg2: memref<32x128xf32, #tpu.memory_space<vmem>>, %arg3: memref<8x32xf32, #tpu.memory_space<vmem>>, %arg4: memref<1x128x128xf32, #tpu.memory_space<vmem>>, %arg5: memref<128x128xf32, #tpu.memory_space<vmem>>, %arg6: memref<8x128xf32, #tpu.memory_space<vmem>>, %arg7: memref<32x128xf32, #tpu.memory_space<vmem>>, %arg8: memref<32x128xf32, #tpu.memory_space<vmem>>, %arg9: memref<32x128xf32, #tpu.memory_space<vmem>>) attributes {dimension_semantics = [#tpu.dimension_semantics<arbitrary>, #tpu.dimension_semantics<arbitrary>], iteration_bounds = array<i64: 3, 4>, scalar_prefetch = 0 : i64, scratch_operands = 3 : i64, tpu.core_type = #tpu.core_type<tc>, window_params = [{pipeline_mode = #tpu.pipeline_mode<synchronous>, transform_indices = @transform_0, window_bounds = array<i64: 32, 128>}, {transform_indices = @transform_1, window_bounds = array<i64: 8, 32>}, {transform_indices = @transform_2, window_bounds = array<i64: 1, 128, 128>}, {pipeline_mode = #tpu.pipeline_mode<synchronous>, transform_indices = @transform_3, window_bounds = array<i64: 128, 128>}, {transform_indices = @transform_4, window_bounds = array<i64: 8, 128>}]} {
    %c8_i32 = arith.constant 8 : i32
    %0 = arith.muli %arg1, %c8_i32 : i32
    %1 = tpu.assume_multiple %0, 8 : i32
    %c0_i32 = arith.constant 0 : i32
    %2 = arith.cmpi eq, %arg1, %c0_i32 : i32
    %3 = arith.extui %2 : i1 to i32
    %c0_i32_0 = arith.constant 0 : i32
    %4 = arith.cmpi ne, %3, %c0_i32_0 : i32
    scf.if %4 {
      %c0_8 = arith.constant 0 : index
      %c0_9 = arith.constant 0 : index
      %c0_10 = arith.constant 0 : index
      %17 = vector.load %arg4[%c0_8, %c0_9, %c0_10] : memref<1x128x128xf32, #tpu.memory_space<vmem>>, vector<1x128x128xf32>
      %18 = vector.shape_cast %17 : vector<1x128x128xf32> to vector<128x128xf32>
      %c0_i32_11 = arith.constant 0 : i32
      %19 = arith.cmpi eq, %arg0, %c0_i32_11 : i32
      %20 = arith.extui %19 : i1 to i32
      %c0_i32_12 = arith.constant 0 : i32
      %21 = arith.cmpi ne, %20, %c0_i32_12 : i32
      scf.if %21 {
        %c0_17 = arith.constant 0 : index
        %c0_18 = arith.constant 0 : index
        %28 = vector.load %arg2[%c0_17, %c0_18] : memref<32x128xf32, #tpu.memory_space<vmem>>, vector<32x128xf32>
        %cst_19 = arith.constant dense<0.000000e+00> : vector<32x128xf32>
        %29 = tpu.matmul %28, %18, %cst_19 {dimension_numbers = #tpu.dot_dimension_numbers<[1], [0], [0], [1], [0, 0, 1, 1], [], []>} : vector<32x128xf32>, vector<128x128xf32>, vector<32x128xf32> -> vector<32x128xf32>
        %c0_20 = arith.constant 0 : index
        %c0_21 = arith.constant 0 : index
        %30 = vector.load %arg7[%c0_20, %c0_21] : memref<32x128xf32, #tpu.memory_space<vmem>>, vector<32x128xf32>
        tpu.vector_store %arg7[%c0_20, %c0_21], %29 {strides = array<i32>} : memref<32x128xf32, #tpu.memory_space<vmem>>, vector<32x128xf32>,
      } else {
      }
      %c1_i32_13 = arith.constant 1 : i32
      %22 = arith.cmpi eq, %arg0, %c1_i32_13 : i32
      %23 = arith.extui %22 : i1 to i32
      %c0_i32_14 = arith.constant 0 : i32
      %24 = arith.cmpi ne, %23, %c0_i32_14 : i32
      scf.if %24 {
        %c0_17 = arith.constant 0 : index
        %c0_18 = arith.constant 0 : index
        %28 = vector.load %arg8[%c0_17, %c0_18] : memref<32x128xf32, #tpu.memory_space<vmem>>, vector<32x128xf32>
        %cst_19 = arith.constant dense<0.000000e+00> : vector<32x128xf32>
        %29 = tpu.matmul %28, %18, %cst_19 {dimension_numbers = #tpu.dot_dimension_numbers<[1], [0], [0], [1], [0, 0, 1, 1], [], []>} : vector<32x128xf32>, vector<128x128xf32>, vector<32x128xf32> -> vector<32x128xf32>
        %c0_20 = arith.constant 0 : index
        %c0_21 = arith.constant 0 : index
        %30 = vector.load %arg7[%c0_20, %c0_21] : memref<32x128xf32, #tpu.memory_space<vmem>>, vector<32x128xf32>
        tpu.vector_store %arg7[%c0_20, %c0_21], %29 {strides = array<i32>} : memref<32x128xf32, #tpu.memory_space<vmem>>, vector<32x128xf32>,
      } else {
      }
      %c2_i32_15 = arith.constant 2 : i32
      %25 = arith.cmpi eq, %arg0, %c2_i32_15 : i32
      %26 = arith.extui %25 : i1 to i32
      %c0_i32_16 = arith.constant 0 : i32
      %27 = arith.cmpi ne, %26, %c0_i32_16 : i32
      scf.if %27 {
        %c0_17 = arith.constant 0 : index
        %c0_18 = arith.constant 0 : index
        %28 = vector.load %arg9[%c0_17, %c0_18] : memref<32x128xf32, #tpu.memory_space<vmem>>, vector<32x128xf32>
        %cst_19 = arith.constant dense<0.000000e+00> : vector<32x128xf32>
        %29 = tpu.matmul %28, %18, %cst_19 {dimension_numbers = #tpu.dot_dimension_numbers<[1], [0], [0], [1], [0, 0, 1, 1], [], []>} : vector<32x128xf32>, vector<128x128xf32>, vector<32x128xf32> -> vector<32x128xf32>
        %c0_20 = arith.constant 0 : index
        %c0_21 = arith.constant 0 : index
        %30 = vector.load %arg7[%c0_20, %c0_21] : memref<32x128xf32, #tpu.memory_space<vmem>>, vector<32x128xf32>
        tpu.vector_store %arg7[%c0_20, %c0_21], %29 {strides = array<i32>} : memref<32x128xf32, #tpu.memory_space<vmem>>, vector<32x128xf32>,
      } else {
      }
    } else {
    }
    %c0 = arith.constant 0 : index
    %c0_1 = arith.constant 0 : index
    %5 = vector.load %arg3[%c0, %c0_1] : memref<8x32xf32, #tpu.memory_space<vmem>>, vector<8x32xf32>
    %c0_2 = arith.constant 0 : index
    %c0_3 = arith.constant 0 : index
    %6 = vector.load %arg7[%c0_2, %c0_3] : memref<32x128xf32, #tpu.memory_space<vmem>>, vector<32x128xf32>
    %cst = arith.constant dense<0.000000e+00> : vector<8x128xf32>
    %7 = tpu.matmul %5, %6, %cst {dimension_numbers = #tpu.dot_dimension_numbers<[1], [0], [0], [1], [0, 0, 1, 1], [], []>} : vector<8x32xf32>, vector<32x128xf32>, vector<8x128xf32> -> vector<8x128xf32>
    %c0_i32_4 = arith.constant 0 : i32
    %8 = arith.cmpi eq, %arg0, %c0_i32_4 : i32
    %9 = arith.extui %8 : i1 to i32
    %c0_i32_5 = arith.constant 0 : i32
    %10 = arith.cmpi ne, %9, %c0_i32_5 : i32
    scf.if %10 {
      %cst_8 = arith.constant 0.000000e+00 : f32
      %17 = vector.broadcast %cst_8 : f32 to vector<8x128xf32>
      %18 = arith.maximumf %7, %17 : vector<8x128xf32>
      %19 = arith.index_cast %1 : i32 to index
      %c0_9 = arith.constant 0 : index
      %20 = vector.load %arg8[%19, %c0_9] : memref<32x128xf32, #tpu.memory_space<vmem>>, vector<8x128xf32>
      tpu.vector_store %arg8[%19, %c0_9], %18 {strides = array<i32>} : memref<32x128xf32, #tpu.memory_space<vmem>>, vector<8x128xf32>,
    } else {
    }
    %c1_i32 = arith.constant 1 : i32
    %11 = arith.cmpi eq, %arg0, %c1_i32 : i32
    %12 = arith.extui %11 : i1 to i32
    %c0_i32_6 = arith.constant 0 : i32
    %13 = arith.cmpi ne, %12, %c0_i32_6 : i32
    scf.if %13 {
      %cst_8 = arith.constant 0.000000e+00 : f32
      %17 = vector.broadcast %cst_8 : f32 to vector<8x128xf32>
      %18 = arith.maximumf %7, %17 : vector<8x128xf32>
      %19 = math.absf %7 : vector<8x128xf32>
      %cst_9 = arith.constant 0.000000e+00 : f32
      %20 = vector.broadcast %cst_9 : f32 to vector<8x128xf32>
      %21 = arith.subf %20, %19 : vector<8x128xf32>
      %22 = math.exp %21 : vector<8x128xf32>
      %23 = math.log1p %22 : vector<8x128xf32>
      %24 = arith.addf %18, %23 : vector<8x128xf32>
      %25 = math.tanh %24 : vector<8x128xf32>
      %26 = arith.mulf %7, %25 : vector<8x128xf32>
      %27 = arith.index_cast %1 : i32 to index
      %c0_10 = arith.constant 0 : index
      %28 = vector.load %arg9[%27, %c0_10] : memref<32x128xf32, #tpu.memory_space<vmem>>, vector<8x128xf32>
      tpu.vector_store %arg9[%27, %c0_10], %26 {strides = array<i32>} : memref<32x128xf32, #tpu.memory_space<vmem>>, vector<8x128xf32>,
    } else {
    }
    %c2_i32 = arith.constant 2 : i32
    %14 = arith.cmpi eq, %arg0, %c2_i32 : i32
    %15 = arith.extui %14 : i1 to i32
    %c0_i32_7 = arith.constant 0 : i32
    %16 = arith.cmpi ne, %15, %c0_i32_7 : i32
    scf.if %16 {
      %cst_8 = arith.constant 0.000000e+00 : f32
      %17 = vector.broadcast %cst_8 : f32 to vector<8x128xf32>
      %18 = arith.maximumf %7, %17 : vector<8x128xf32>
      %19 = math.absf %7 : vector<8x128xf32>
      %cst_9 = arith.constant 0.000000e+00 : f32
      %20 = vector.broadcast %cst_9 : f32 to vector<8x128xf32>
      %21 = arith.subf %20, %19 : vector<8x128xf32>
      %22 = math.exp %21 : vector<8x128xf32>
      %23 = math.log1p %22 : vector<8x128xf32>
      %24 = arith.addf %18, %23 : vector<8x128xf32>
      %25 = math.tanh %24 : vector<8x128xf32>
      %26 = arith.mulf %7, %25 : vector<8x128xf32>
      %c0_10 = arith.constant 0 : index
      %c0_11 = arith.constant 0 : index
      %27 = vector.load %arg5[%c0_10, %c0_11] : memref<128x128xf32, #tpu.memory_space<vmem>>, vector<128x128xf32>
      %cst_12 = arith.constant dense<0.000000e+00> : vector<8x128xf32>
      %28 = tpu.matmul %26, %27, %cst_12 {dimension_numbers = #tpu.dot_dimension_numbers<[1], [0], [0], [1], [0, 0, 1, 1], [], []>} : vector<8x128xf32>, vector<128x128xf32>, vector<8x128xf32> -> vector<8x128xf32>
      %c0_13 = arith.constant 0 : index
      %c0_14 = arith.constant 0 : index
      %29 = vector.load %arg6[%c0_13, %c0_14] : memref<8x128xf32, #tpu.memory_space<vmem>>, vector<8x128xf32>
      tpu.vector_store %arg6[%c0_13, %c0_14], %28 {strides = array<i32>} : memref<8x128xf32, #tpu.memory_space<vmem>>, vector<8x128xf32>,
    } else {
    }
    return
  }
  func.func @transform_0(%arg0: i32, %arg1: i32) -> (i32, i32) {
    %c0_i32 = arith.constant 0 : i32
    %c0_i32_0 = arith.constant 0 : i32
    %c0_i32_1 = arith.constant 0 : i32
    return %c0_i32, %c0_i32_0 : i32, i32
  }
  func.func @transform_1(%arg0: i32, %arg1: i32) -> (i32, i32) {
    %c0_i32 = arith.constant 0 : i32
    %c0_i32_0 = arith.constant 0 : i32
    return %arg1, %c0_i32 : i32, i32
  }
  func.func @transform_2(%arg0: i32, %arg1: i32) -> (i32, i32, i32) {
    %c0_i32 = arith.constant 0 : i32
    %c0_i32_0 = arith.constant 0 : i32
    %c0_i32_1 = arith.constant 0 : i32
    return %arg0, %c0_i32, %c0_i32_0 : i32, i32, i32
  }
  func.func @transform_3(%arg0: i32, %arg1: i32) -> (i32, i32) {
    %c0_i32 = arith.constant 0 : i32
    %c0_i32_0 = arith.constant 0 : i32
    %c0_i32_1 = arith.constant 0 : i32
    return %c0_i32, %c0_i32_0 : i32, i32
  }
  func.func @transform_4(%arg0: i32, %arg1: i32) -> (i32, i32) {
    %c0_i32 = arith.constant 0 : i32
    %c0_i32_0 = arith.constant 0 : i32
    return %arg1, %c0_i32 : i32, i32
  }
}

</mosaic_0001>

<llo_original>
// kernel: tpu_custom_call.1
$region0: #{tpu_custom_call.1}
  #allocation0 [shape = 'u32[]', space=smem, size = 0x4, offset = 0x4, fixed_abs, tag = 'smem constant byte address 0x4 - core index']
  #allocation1 [shape = 'u32[144,128]{1,0:T(1,128)}', space=vmem, size = 0x12000, scoped, tag = 'internal scratch']
  #allocation2 [shape = 'f32[32,128]{1,0:T(8,128)}', space=vmem, size = 0x4000, scoped, tag = 'scratch operand']
  #allocation3 [shape = 'f32[32,128]{1,0:T(8,128)}', space=vmem, size = 0x4000, scoped, tag = 'scratch operand']
  #allocation4 [shape = 'f32[32,128]{1,0:T(8,128)}', space=vmem, size = 0x4000, scoped, tag = 'scratch operand']
  %s0 = inlined_call_operand.hbm [shape: f32[32,128], index: 0, kind: input, shape index: {}]
  %s1 = inlined_call_operand.hbm [shape: f32[32,32], index: 1, kind: input, shape index: {}]
  %s2 = inlined_call_operand.hbm [shape: f32[3,128,128], index: 2, kind: input, shape index: {}]
  %s3 = inlined_call_operand.hbm [shape: f32[128,128], index: 3, kind: input, shape index: {}]
  %s4 = inlined_call_operand.hbm [shape: f32[32,128], index: 4, kind: output, shape index: {}]
  %s5 = sld [smem:[#allocation0]]
  $region93: #{tpu_custom_call.1} parent=0
    _
  %s7 = ssub.s32 1, %s5
  %s8 = scalar_select 0, %s7, %s5
  $region1: #{tpu_custom_call.1} parent=0
    #allocation5 [shape = 'u8[16384]{0}', space=vmem, size = 0x4000, scoped, tag = 'input window, operand 0, single buffered']
    #allocation6 [shape = 's32[2]{0}', space=sflag, size = 0x8, scoped, tag = 'scoped memory for tpu_custom_call.1']
    #allocation7 [shape = 's32[2]{0}', space=sflag, size = 0x8, scoped, tag = 'scoped memory for tpu_custom_call.1']
    #allocation8 [shape = 'u8[8192]{0}', space=vmem, size = 0x2000, scoped, tag = 'input window, operand 1']
    #allocation9 [shape = 's32[2]{0}', space=sflag, size = 0x8, scoped, tag = 'scoped memory for tpu_custom_call.1']
    #allocation10 [shape = 'u8[131072]{0}', space=vmem, size = 0x20000, scoped, tag = 'input window, operand 2']
    #allocation11 [shape = 'u8[65536]{0}', space=vmem, size = 0x10000, scoped, tag = 'input window, operand 3, single buffered']
    #allocation12 [shape = 's32[1]{0}', space=sflag, size = 0x4, scoped, tag = 'scoped memory for tpu_custom_call.1']
    #allocation13 [shape = 'u8[8192]{0}', space=vmem, size = 0x2000, scoped, tag = 'output window, operand 0']
    %9 = vsyncpa [#allocation6], 0
    %10 = vsyncpa [#allocation9], 0
    %s11 = scalar_lea.sflag [#allocation9], 1
    %12 = vsyncpa %s11, 0
    %13 = vsyncpa [#allocation12], 0
    %14 = vsyncpa [#allocation7], 0
    %s15 = scalar_lea.sflag [#allocation7], 1
    %16 = vsyncpa %s15, 0
    loop: start=0, step=1, limit=14
    $region2: #{tpu_custom_call.1} parent=1 // loop_pre_header
      _
    $region3: #{tpu_custom_call.1} parent=1 // loop_header
      %s18 = sphi 0, %s22
      %p19 = scmp.ge.s32.totalorder %s18, 14
      %s25 = sphi 0, %s37
      %s26 = sphi 0, %s33
      %s27 = sphi 0, %s25
      %s28 = sphi 0, %s26
      %s29 = sphi 0, %s27
      %s30 = sphi 0, %s28
      %s38 = sphi 0, %s38
      %s40 = sphi 0, %s38
      %s41 = sphi 0, %s40
      %s55 = sphi 0, %s41
      %s61 = sphi 0, %s63
      %s64 = sphi 0, %s61
      %s65 = sphi 0, %s64
      %s81 = sphi 0, %s65
      %s87 = sphi 0, %s89
      %s90 = sphi 0, %s87
      %s91 = sphi 0, %s90
      %s107 = sphi 0, %s91
      %s111 = sphi 0, %s111
      %s113 = sphi 0, %s111
      %s114 = sphi 0, %s113
      %s128 = sphi 0, %s114
      %s134 = sphi 0, %s136
      %s137 = sphi 0, %s134
      %s138 = sphi 0, %s137
      %s154 = sphi 0, %s138
    $region4: #{tpu_custom_call.1} parent=1 // loop_header_branch
      %21 = sbr.rel (%p19) target = $region8
    $region5: #{tpu_custom_call.1} parent=1 // loop_body
      %s23 = ssub.s32 %s18, 1
      %s24 = ssub.s32 %s18, 2
      %s31 = sadd.s32 1, %s26
      %p32 = scmp.ge.s32.totalorder %s31, 4
      %s33 = scalar_select %p32, 0, %s31
      %s34 = sadd.s32 1, %s25
      %s35 = scalar_select %p32, %s34, %s25
      %p36 = scmp.ge.s32.totalorder %s35, 3
      %s37 = scalar_select %p36, 0, %s35
      %s39 = sadd.s32 %s38, 1
      %p42 = scmp.eq.s32.totalorder %s18, 11
      %p43 = scmp.ne.s32.totalorder %s38, %s40
      %p44 = scmp.eq.s32.totalorder %s18, 0
      %p45 = por %p43, %p44
      %p46 = scmp.ne.s32.totalorder %s38, %s40
      %p47 = scmp.eq.s32.totalorder %s23, 11
      %p48 = por %p46, %p47
      %p49 = scmp.ne.s32.totalorder %s40, %s41
      %p50 = scmp.eq.s32.totalorder %s23, 0
      %p51 = por %p49, %p50
      %p52 = scmp.ne.s32.totalorder %s40, %s41
      %p53 = scmp.eq.s32.totalorder %s24, 11
      %p54 = por %p52, %p53
      %p56 = scmp.ne.s32.totalorder %s41, %s55
      %p57 = scmp.eq.s32.totalorder %s24, 0
      %p58 = por %p56, %p57
      %s59 = ssub.s32 %s26, %s33
      %p60 = scmp.eq.s32.totalorder %s59, 0
      %s62 = sadd.s32 %s61, 1
      %s63 = scalar_select %p60, %s61, %s62
      %p66 = pneg %p60
      %p67 = scmp.eq.s32.totalorder %s18, 11
      %p68 = por %p66, %p67
      %p69 = scmp.ne.s32.totalorder %s61, %s64
      %p70 = scmp.eq.s32.totalorder %s18, 0
      %p71 = por %p69, %p70
      %p72 = scmp.ne.s32.totalorder %s61, %s64
      %p73 = scmp.eq.s32.totalorder %s23, 11
      %p74 = por %p72, %p73
      %p75 = scmp.ne.s32.totalorder %s64, %s65
      %p76 = scmp.eq.s32.totalorder %s23, 0
      %p77 = por %p75, %p76
      %p78 = scmp.ne.s32.totalorder %s64, %s65
      %p79 = scmp.eq.s32.totalorder %s24, 11
      %p80 = por %p78, %p79
      %p82 = scmp.ne.s32.totalorder %s65, %s81
      %p83 = scmp.eq.s32.totalorder %s24, 0
      %p84 = por %p82, %p83
      %s85 = ssub.s32 %s25, %s37
      %p86 = scmp.eq.s32.totalorder %s85, 0
      %s88 = sadd.s32 %s87, 1
      %s89 = scalar_select %p86, %s87, %s88
      %p92 = pneg %p86
      %p93 = scmp.eq.s32.totalorder %s18, 11
      %p94 = por %p92, %p93
      %p95 = scmp.ne.s32.totalorder %s87, %s90
      %p96 = scmp.eq.s32.totalorder %s18, 0
      %p97 = por %p95, %p96
      %p98 = scmp.ne.s32.totalorder %s87, %s90
      %p99 = scmp.eq.s32.totalorder %s23, 11
      %p100 = por %p98, %p99
      %p101 = scmp.ne.s32.totalorder %s90, %s91
      %p102 = scmp.eq.s32.totalorder %s23, 0
      %p103 = por %p101, %p102
      %p104 = scmp.ne.s32.totalorder %s90, %s91
      %p105 = scmp.eq.s32.totalorder %s24, 11
      %p106 = por %p104, %p105
      %p108 = scmp.ne.s32.totalorder %s91, %s107
      %p109 = scmp.eq.s32.totalorder %s24, 0
      %p110 = por %p108, %p109
      %s112 = sadd.s32 %s111, 1
      %p115 = scmp.eq.s32.totalorder %s18, 11
      %p116 = scmp.ne.s32.totalorder %s111, %s113
      %p117 = scmp.eq.s32.totalorder %s18, 0
      %p118 = por %p116, %p117
      %p119 = scmp.ne.s32.totalorder %s111, %s113
      %p120 = scmp.eq.s32.totalorder %s23, 11
      %p121 = por %p119, %p120
      %p122 = scmp.ne.s32.totalorder %s113, %s114
      %p123 = scmp.eq.s32.totalorder %s23, 0
      %p124 = por %p122, %p123
      %p125 = scmp.ne.s32.totalorder %s113, %s114
      %p126 = scmp.eq.s32.totalorder %s24, 11
      %p127 = por %p125, %p126
      %p129 = scmp.ne.s32.totalorder %s114, %s128
      %p130 = scmp.eq.s32.totalorder %s24, 0
      %p131 = por %p129, %p130
      %s132 = ssub.s32 %s26, %s33
      %p133 = scmp.eq.s32.totalorder %s132, 0
      %s135 = sadd.s32 %s134, 1
      %s136 = scalar_select %p133, %s134, %s135
      %p139 = pneg %p133
      %p140 = scmp.eq.s32.totalorder %s18, 11
      %p141 = por %p139, %p140
      %p142 = scmp.ne.s32.totalorder %s134, %s137
      %p143 = scmp.eq.s32.totalorder %s18, 0
      %p144 = por %p142, %p143
      %p145 = scmp.ne.s32.totalorder %s134, %s137
      %p146 = scmp.eq.s32.totalorder %s23, 11
      %p147 = por %p145, %p146
      %p148 = scmp.ne.s32.totalorder %s137, %s138
      %p149 = scmp.eq.s32.totalorder %s23, 0
      %p150 = por %p148, %p149
      %p151 = scmp.ne.s32.totalorder %s137, %s138
      %p152 = scmp.eq.s32.totalorder %s24, 11
      %p153 = por %p151, %p152
      %p155 = scmp.ne.s32.totalorder %s138, %s154
      %p156 = scmp.eq.s32.totalorder %s24, 0
      %p157 = por %p155, %p156
      %p158 = scmp.le.s32.totalorder 1, %s18
      %p159 = scmp.lt.s32.totalorder %s18, 13
      %p160 = pnand %p158, %p159
      %p161 = pneg %p160
      // Predicated region
      $region9: #{tpu_custom_call.1} parent=5 // pred_check
        _
      $region10: #{tpu_custom_call.1} parent=5 // pred_check_branch
        %163 = sbr.rel (%p160) target = $region12
      $region11: #{tpu_custom_call.1} parent=5 // pred_region
        %s164 = ssub.s32 %s18, 1
        // Predicated region
        $region13: #{tpu_custom_call.1} parent=11 // pred_check
          %p165 = pneg %p51
        $region14: #{tpu_custom_call.1} parent=11 // pred_check_branch
          %167 = sbr.rel (%p165) target = $region16
        $region15: #{tpu_custom_call.1} parent=11 // pred_region
          %s169 = ssub.s32 512, 512
          %170 = vsyncadd [#allocation6], %s169
          %s171 = sshll.u32 [#allocation5], 4
          %s172 = int_to_ptr.vmem [resolvable:$true] %s171
          %177 = dma.hbm_to_vmem [thread:$0]  %s0, 512, %s172, [#allocation6], 128, 128, 8
        $region16: #{tpu_custom_call.1} parent=11 // pred_fallthru
          _
        // Predicated region
        $region17: #{tpu_custom_call.1} parent=11 // pred_check
          %p178 = pneg %p124
        $region18: #{tpu_custom_call.1} parent=11 // pred_check_branch
          %180 = sbr.rel (%p178) target = $region20
        $region19: #{tpu_custom_call.1} parent=11 // pred_region
          %s182 = ssub.s32 2048, 2048
          %183 = vsyncadd [#allocation12], %s182
          %s184 = sshll.u32 [#allocation11], 4
          %s185 = int_to_ptr.vmem [resolvable:$true] %s184
          %190 = dma.hbm_to_vmem [thread:$0]  %s3, 2048, %s185, [#allocation12], 128, 128, 8
        $region20: #{tpu_custom_call.1} parent=11 // pred_fallthru
          _
      $region12: #{tpu_custom_call.1} parent=5 // pred_fallthru
        _
      %p191 = scmp.lt.s32.totalorder %s18, 12
      // Predicated region
      $region21: #{tpu_custom_call.1} parent=5 // pred_check
        %p192 = pneg %p191
      $region22: #{tpu_custom_call.1} parent=5 // pred_check_branch
        %194 = sbr.rel (%p192) target = $region24
      $region23: #{tpu_custom_call.1} parent=5 // pred_region
        // Predicated region
        $region25: #{tpu_custom_call.1} parent=23 // pred_check
          %p195 = pneg %p71
        $region26: #{tpu_custom_call.1} parent=23 // pred_check_branch
          %197 = sbr.rel (%p195) target = $region28
        $region27: #{tpu_custom_call.1} parent=23 // pred_region
          %s198 = sand.u32 %s18, 1
          %s199 = scalar_lea.sflag [#allocation9], %s198
          %s200 = sand.u32 %s61, 1
          %s201 = smul.addr %s200, 8
          %s202 = scalar_lea.vmem [#allocation8], %s201
          %s204 = ssub.s32 128, 128
          %205 = vsyncadd %s199, %s204
          %s206 = smul.addr %s26, 128
          %s207 = scalar_lea.hbm %s1, %s206
          %s209 = sshll.u32 %s202, 4
          %s210 = int_to_ptr.vmem [resolvable:$true] %s209
          %212 = dma.hbm_to_vmem [thread:$0]  %s207, 128, %s210, %s199
        $region28: #{tpu_custom_call.1} parent=23 // pred_fallthru
          _
        // Predicated region
        $region29: #{tpu_custom_call.1} parent=23 // pred_check
          %p213 = pneg %p97
        $region30: #{tpu_custom_call.1} parent=23 // pred_check_branch
          %215 = sbr.rel (%p213) target = $region32
        $region31: #{tpu_custom_call.1} parent=23 // pred_region
          %s216 = sand.u32 %s18, 1
          %s217 = scalar_lea.sflag [#allocation9], %s216
          %s218 = sand.u32 %s87, 1
          %s219 = smul.addr %s218, 128
          %s220 = scalar_lea.vmem [#allocation10], %s219
          %s222 = ssub.s32 2048, 2048
          %223 = vsyncadd %s217, %s222
          %s224 = smul.addr %s25, 16
          %s225 = smul.addr %s224, 128
          %s226 = scalar_lea.hbm %s2, %s225
          %s227 = sshll.u32 %s220, 4
          %s228 = int_to_ptr.vmem [resolvable:$true] %s227
          %233 = dma.hbm_to_vmem [thread:$0]  %s226, 2048, %s228, %s217, 128, 128, 8
        $region32: #{tpu_custom_call.1} parent=23 // pred_fallthru
          _
      $region24: #{tpu_custom_call.1} parent=5 // pred_fallthru
        _
      %p234 = scmp.le.s32.totalorder 1, %s18
      %p235 = scmp.lt.s32.totalorder %s18, 13
      %p236 = pnand %p234, %p235
      %p237 = pneg %p236
      // Predicated region
      $region33: #{tpu_custom_call.1} parent=5 // pred_check
        _
      $region34: #{tpu_custom_call.1} parent=5 // pred_check_branch
        %239 = sbr.rel (%p236) target = $region36
      $region35: #{tpu_custom_call.1} parent=5 // pred_region
        %s240 = ssub.s32 %s18, 1
        // Predicated region
        $region37: #{tpu_custom_call.1} parent=35 // pred_check
          %p241 = pneg %p51
        $region38: #{tpu_custom_call.1} parent=35 // pred_check_branch
          %243 = sbr.rel (%p241) target = $region40
        $region39: #{tpu_custom_call.1} parent=35 // pred_region
          %244 = dma.done [#allocation6], 512
        $region40: #{tpu_custom_call.1} parent=35 // pred_fallthru
          _
        %s245 = sand.u32 %s23, 1
        %s246 = scalar_lea.sflag [#allocation9], %s245
        %s247 = sand.u32 %s64, 1
        %s248 = smul.addr %s247, 8
        %s249 = scalar_lea.vmem [#allocation8], %s248
        // Predicated region
        $region41: #{tpu_custom_call.1} parent=35 // pred_check
          %p250 = pneg %p77
        $region42: #{tpu_custom_call.1} parent=35 // pred_check_branch
          %252 = sbr.rel (%p250) target = $region44
        $region43: #{tpu_custom_call.1} parent=35 // pred_region
          %253 = dma.done %s246, 128
        $region44: #{tpu_custom_call.1} parent=35 // pred_fallthru
          _
        %s254 = sand.u32 %s23, 1
        %s255 = scalar_lea.sflag [#allocation9], %s254
        %s256 = sand.u32 %s90, 1
        %s257 = smul.addr %s256, 128
        %s258 = scalar_lea.vmem [#allocation10], %s257
        // Predicated region
        $region45: #{tpu_custom_call.1} parent=35 // pred_check
          %p259 = pneg %p103
        $region46: #{tpu_custom_call.1} parent=35 // pred_check_branch
          %261 = sbr.rel (%p259) target = $region48
        $region47: #{tpu_custom_call.1} parent=35 // pred_region
          %262 = dma.done %s255, 2048
        $region48: #{tpu_custom_call.1} parent=35 // pred_fallthru
          _
        // Predicated region
        $region49: #{tpu_custom_call.1} parent=35 // pred_check
          %p263 = pneg %p124
        $region50: #{tpu_custom_call.1} parent=35 // pred_check_branch
          %265 = sbr.rel (%p263) target = $region52
        $region51: #{tpu_custom_call.1} parent=35 // pred_region
          %266 = dma.done [#allocation12], 2048
        $region52: #{tpu_custom_call.1} parent=35 // pred_fallthru
          _
        %p267 = pneg %p51
        %p268 = pneg %p48
        %s269 = sand.u32 %s23, 1
        %s270 = scalar_lea.sflag [#allocation9], %s269
        %s271 = sand.u32 %s64, 1
        %s272 = smul.addr %s271, 8
        %s273 = scalar_lea.vmem [#allocation8], %s272
        %p274 = pneg %p77
        %p275 = pneg %p74
        %s276 = sand.u32 %s23, 1
        %s277 = scalar_lea.sflag [#allocation9], %s276
        %s278 = sand.u32 %s90, 1
        %s279 = smul.addr %s278, 128
        %s280 = scalar_lea.vmem [#allocation10], %s279
        %p281 = pneg %p103
        %p282 = pneg %p100
        %p283 = pneg %p124
        %p284 = pneg %p121
        %p285 = pneg %p150
        %p286 = pneg %p147
        %s287 = sand.u32 %s137, 1
        %s288 = scalar_lea.sflag [#allocation7], %s287
        %s289 = sand.u32 %s137, 1
        %s290 = smul.addr %s289, 8
        %s291 = scalar_lea.vmem [#allocation13], %s290
        %s292 = smul.u32 %s28, 8
        %p293 = scmp.eq.s32.totalorder %s28, 0
        // Predicated region
        $region53: #{tpu_custom_call.1} parent=35 // pred_check
          %p294 = pneg %p293
        $region54: #{tpu_custom_call.1} parent=35 // pred_check_branch
          %296 = sbr.rel (%p294) target = $region56
        $region55: #{tpu_custom_call.1} parent=35 // pred_region
          %v297 = vld [vmem:[%s258] sm:$0xff]
          %v298 = vld [vmem:[%s258 + $0x8] sm:$0xff]
          %v299 = vld [vmem:[%s258 + $0x10] sm:$0xff]
          %v300 = vld [vmem:[%s258 + $0x18] sm:$0xff]
          %v301 = vld [vmem:[%s258 + $0x20] sm:$0xff]
          %v302 = vld [vmem:[%s258 + $0x28] sm:$0xff]
          %v303 = vld [vmem:[%s258 + $0x30] sm:$0xff]
          %v304 = vld [vmem:[%s258 + $0x38] sm:$0xff]
          %v305 = vld [vmem:[%s258 + $0x40] sm:$0xff]
          %v306 = vld [vmem:[%s258 + $0x48] sm:$0xff]
          %v307 = vld [vmem:[%s258 + $0x50] sm:$0xff]
          %v308 = vld [vmem:[%s258 + $0x58] sm:$0xff]
          %v309 = vld [vmem:[%s258 + $0x60] sm:$0xff]
          %v310 = vld [vmem:[%s258 + $0x68] sm:$0xff]
          %v311 = vld [vmem:[%s258 + $0x70] sm:$0xff]
          %v312 = vld [vmem:[%s258 + $0x78] sm:$0xff]
          %p313 = scmp.eq.s32.totalorder %s27, 0
          // Predicated region
          $region57: #{tpu_custom_call.1} parent=55 // pred_check
            %p314 = pneg %p313
          $region58: #{tpu_custom_call.1} parent=55 // pred_check_branch
            %316 = sbr.rel (%p314) target = $region60
          $region59: #{tpu_custom_call.1} parent=55 // pred_region
            %v317 = vld [vmem:[#allocation5] sm:$0xff]
            %v318 = vld [vmem:[#allocation5 + $0x8] sm:$0xff]
            %v319 = vld [vmem:[#allocation5 + $0x10] sm:$0xff]
            %v320 = vld [vmem:[#allocation5 + $0x18] sm:$0xff]
            %321 = vmatprep.subr.mxu0 0.0
            %322 = vmatpush1.msra.mxu0 %v297
            %323 = vmatprep.subr.mxu0 0.0
            %324 = vmatpush1.msra.mxu0 %v298
            %325 = vmatprep.subr.mxu0 0.0
            %326 = vmatpush1.msra.mxu0 %v299
            %327 = vmatprep.subr.mxu0 0.0
            %328 = vmatpush1.msra.mxu0 %v300
            %329 = vmatprep.subr.mxu0 0.0
            %330 = vmatpush1.msra.mxu0 %v301
            %331 = vmatprep.subr.mxu0 0.0
            %332 = vmatpush1.msra.mxu0 %v302
            %333 = vmatprep.subr.mxu0 0.0
            %334 = vmatpush1.msra.mxu0 %v303
            %335 = vmatprep.subr.mxu0 0.0
            %336 = vmatpush1.msra.mxu0 %v304
            %337 = vmatprep.subr.mxu0 0.0
            %338 = vmatpush1.msra.mxu0 %v305
            %339 = vmatprep.subr.mxu0 0.0
            %340 = vmatpush1.msra.mxu0 %v306
            %341 = vmatprep.subr.mxu0 0.0
            %342 = vmatpush1.msra.mxu0 %v307
            %343 = vmatprep.subr.mxu0 0.0
            %344 = vmatpush1.msra.mxu0 %v308
            %345 = vmatprep.subr.mxu0 0.0
            %346 = vmatpush1.msra.mxu0 %v309
            %347 = vmatprep.subr.mxu0 0.0
            %348 = vmatpush1.msra.mxu0 %v310
            %349 = vmatprep.subr.mxu0 0.0
            %350 = vmatpush1.msra.mxu0 %v311
            %351 = vmatprep.subr.mxu0 0.0
            %352 = vmatpush1.msra.mxu0 %v312
            %353 = vmatprep.subr.mxu0 0.0
            %354 = vmatpush1.msra.mxu0 0.0
            %355 = vmatprep.subr.mxu0 0.0
            %356 = vmatpush1.msra.mxu0 0.0
            %357 = vmatprep.subr.mxu0 0.0
            %358 = vmatpush1.msra.mxu0 0.0
            %359 = vmatprep.subr.mxu0 0.0
            %360 = vmatpush1.msra.mxu0 0.0
            %361 = vmatprep.subr.mxu0 0.0
            %362 = vmatpush1.msra.mxu0 0.0
            %363 = vmatprep.subr.mxu0 0.0
            %364 = vmatpush1.msra.mxu0 0.0
            %365 = vmatprep.subr.mxu0 0.0
            %366 = vmatpush1.msra.mxu0 0.0
            %367 = vmatprep.subr.mxu0 0.0
            %368 = vmatpush1.msra.mxu0 0.0
            %369 = vmatprep.subr.mxu0 0.0
            %370 = vmatpush1.msra.mxu0 0.0
            %371 = vmatprep.subr.mxu0 0.0
            %372 = vmatpush1.msra.mxu0 0.0
            %373 = vmatprep.subr.mxu0 0.0
            %374 = vmatpush1.msra.mxu0 0.0
            %375 = vmatprep.subr.mxu0 0.0
            %376 = vmatpush1.msra.mxu0 0.0
            %377 = vmatprep.subr.mxu0 0.0
            %378 = vmatpush1.msra.mxu0 0.0
            %379 = vmatprep.subr.mxu0 0.0
            %380 = vmatpush1.msra.mxu0 0.0
            %381 = vmatprep.subr.mxu0 0.0
            %382 = vmatpush1.msra.mxu0 0.0
            %383 = vmatprep.subr.mxu0 0.0
            %384 = vmatpush1.msra.mxu0 0.0
            %385 = vmatprep.mubr.f32.mxu0 0.0
            %386 = vmatmul.mubr.f32.gmra.mrb[0].mxu0 %v317
            %v387 = vpop.f32.mrb[0].mxu0
            %v388 = vadd.f32 0.0, %v387
            %v389 = vpop.f32.mrb[0].mxu0
            %390 = vmatprep.mubr.f32.mxu0 0.0
            %391 = vmatmul.mubr.f32.gmra.mrb[0].mxu0 %v318
            %v392 = vpop.f32.mrb[0].mxu0
            %v393 = vadd.f32 0.0, %v392
            %v394 = vpop.f32.mrb[0].mxu0
            %395 = vmatprep.mubr.f32.mxu0 0.0
            %396 = vmatmul.mubr.f32.gmra.mrb[0].mxu0 %v319
            %v397 = vpop.f32.mrb[0].mxu0
            %v398 = vadd.f32 0.0, %v397
            %v399 = vpop.f32.mrb[0].mxu0
            %400 = vmatprep.mubr.f32.mxu0 0.0
            %401 = vmatmul.mubr.f32.gmra.mrb[0].mxu0 %v320
            %v402 = vpop.f32.mrb[0].mxu0
            %v403 = vadd.f32 0.0, %v402
            %v404 = vpop.f32.mrb[0].mxu0
            %405 = vdwg.mxu0
            %406 = vst [vmem:[#allocation2] sm:$0xff] %v388
            %407 = vst [vmem:[#allocation2 + $0x8] sm:$0xff] %v393
            %408 = vst [vmem:[#allocation2 + $0x10] sm:$0xff] %v398
            %409 = vst [vmem:[#allocation2 + $0x18] sm:$0xff] %v403
          $region60: #{tpu_custom_call.1} parent=55 // pred_fallthru
            _
          %p410 = scmp.eq.s32.totalorder %s27, 1
          // Predicated region
          $region61: #{tpu_custom_call.1} parent=55 // pred_check
            %p411 = pneg %p410
          $region62: #{tpu_custom_call.1} parent=55 // pred_check_branch
            %413 = sbr.rel (%p411) target = $region64
          $region63: #{tpu_custom_call.1} parent=55 // pred_region
            %v414 = vld [vmem:[#allocation3] sm:$0xff]
            %v415 = vld [vmem:[#allocation3 + $0x8] sm:$0xff]
            %v416 = vld [vmem:[#allocation3 + $0x10] sm:$0xff]
            %v417 = vld [vmem:[#allocation3 + $0x18] sm:$0xff]
            %418 = vmatprep.subr.mxu0 0.0
            %419 = vmatpush1.msra.mxu0 %v297
            %420 = vmatprep.subr.mxu0 0.0
            %421 = vmatpush1.msra.mxu0 %v298
            %422 = vmatprep.subr.mxu0 0.0
            %423 = vmatpush1.msra.mxu0 %v299
            %424 = vmatprep.subr.mxu0 0.0
            %425 = vmatpush1.msra.mxu0 %v300
            %426 = vmatprep.subr.mxu0 0.0
            %427 = vmatpush1.msra.mxu0 %v301
            %428 = vmatprep.subr.mxu0 0.0
            %429 = vmatpush1.msra.mxu0 %v302
            %430 = vmatprep.subr.mxu0 0.0
            %431 = vmatpush1.msra.mxu0 %v303
            %432 = vmatprep.subr.mxu0 0.0
            %433 = vmatpush1.msra.mxu0 %v304
            %434 = vmatprep.subr.mxu0 0.0
            %435 = vmatpush1.msra.mxu0 %v305
            %436 = vmatprep.subr.mxu0 0.0
            %437 = vmatpush1.msra.mxu0 %v306
            %438 = vmatprep.subr.mxu0 0.0
            %439 = vmatpush1.msra.mxu0 %v307
            %440 = vmatprep.subr.mxu0 0.0
            %441 = vmatpush1.msra.mxu0 %v308
            %442 = vmatprep.subr.mxu0 0.0
            %443 = vmatpush1.msra.mxu0 %v309
            %444 = vmatprep.subr.mxu0 0.0
            %445 = vmatpush1.msra.mxu0 %v310
            %446 = vmatprep.subr.mxu0 0.0
            %447 = vmatpush1.msra.mxu0 %v311
            %448 = vmatprep.subr.mxu0 0.0
            %449 = vmatpush1.msra.mxu0 %v312
            %450 = vmatprep.subr.mxu0 0.0
            %451 = vmatpush1.msra.mxu0 0.0
            %452 = vmatprep.subr.mxu0 0.0
            %453 = vmatpush1.msra.mxu0 0.0
            %454 = vmatprep.subr.mxu0 0.0
            %455 = vmatpush1.msra.mxu0 0.0
            %456 = vmatprep.subr.mxu0 0.0
            %457 = vmatpush1.msra.mxu0 0.0
            %458 = vmatprep.subr.mxu0 0.0
            %459 = vmatpush1.msra.mxu0 0.0
            %460 = vmatprep.subr.mxu0 0.0
            %461 = vmatpush1.msra.mxu0 0.0
            %462 = vmatprep.subr.mxu0 0.0
            %463 = vmatpush1.msra.mxu0 0.0
            %464 = vmatprep.subr.mxu0 0.0
            %465 = vmatpush1.msra.mxu0 0.0
            %466 = vmatprep.subr.mxu0 0.0
            %467 = vmatpush1.msra.mxu0 0.0
            %468 = vmatprep.subr.mxu0 0.0
            %469 = vmatpush1.msra.mxu0 0.0
            %470 = vmatprep.subr.mxu0 0.0
            %471 = vmatpush1.msra.mxu0 0.0
            %472 = vmatprep.subr.mxu0 0.0
            %473 = vmatpush1.msra.mxu0 0.0
            %474 = vmatprep.subr.mxu0 0.0
            %475 = vmatpush1.msra.mxu0 0.0
            %476 = vmatprep.subr.mxu0 0.0
            %477 = vmatpush1.msra.mxu0 0.0
            %478 = vmatprep.subr.mxu0 0.0
            %479 = vmatpush1.msra.mxu0 0.0
            %480 = vmatprep.subr.mxu0 0.0
            %481 = vmatpush1.msra.mxu0 0.0
            %482 = vmatprep.mubr.f32.mxu0 0.0
            %483 = vmatmul.mubr.f32.gmra.mrb[0].mxu0 %v414
            %v484 = vpop.f32.mrb[0].mxu0
            %v485 = vadd.f32 0.0, %v484
            %v486 = vpop.f32.mrb[0].mxu0
            %487 = vmatprep.mubr.f32.mxu0 0.0
            %488 = vmatmul.mubr.f32.gmra.mrb[0].mxu0 %v415
            %v489 = vpop.f32.mrb[0].mxu0
            %v490 = vadd.f32 0.0, %v489
            %v491 = vpop.f32.mrb[0].mxu0
            %492 = vmatprep.mubr.f32.mxu0 0.0
            %493 = vmatmul.mubr.f32.gmra.mrb[0].mxu0 %v416
            %v494 = vpop.f32.mrb[0].mxu0
            %v495 = vadd.f32 0.0, %v494
            %v496 = vpop.f32.mrb[0].mxu0
            %497 = vmatprep.mubr.f32.mxu0 0.0
            %498 = vmatmul.mubr.f32.gmra.mrb[0].mxu0 %v417
            %v499 = vpop.f32.mrb[0].mxu0
            %v500 = vadd.f32 0.0, %v499
            %v501 = vpop.f32.mrb[0].mxu0
            %502 = vdwg.mxu0
            %503 = vst [vmem:[#allocation2] sm:$0xff] %v485
            %504 = vst [vmem:[#allocation2 + $0x8] sm:$0xff] %v490
            %505 = vst [vmem:[#allocation2 + $0x10] sm:$0xff] %v495
            %506 = vst [vmem:[#allocation2 + $0x18] sm:$0xff] %v500
          $region64: #{tpu_custom_call.1} parent=55 // pred_fallthru
            _
          %p507 = scmp.eq.s32.totalorder %s27, 2
          // Predicated region
          $region65: #{tpu_custom_call.1} parent=55 // pred_check
            %p508 = pneg %p507
          $region66: #{tpu_custom_call.1} parent=55 // pred_check_branch
            %510 = sbr.rel (%p508) target = $region68
          $region67: #{tpu_custom_call.1} parent=55 // pred_region
            %v511 = vld [vmem:[#allocation4] sm:$0xff]
            %v512 = vld [vmem:[#allocation4 + $0x8] sm:$0xff]
            %v513 = vld [vmem:[#allocation4 + $0x10] sm:$0xff]
            %v514 = vld [vmem:[#allocation4 + $0x18] sm:$0xff]
            %515 = vmatprep.subr.mxu0 0.0
            %516 = vmatpush1.msra.mxu0 %v297
            %517 = vmatprep.subr.mxu0 0.0
            %518 = vmatpush1.msra.mxu0 %v298
            %519 = vmatprep.subr.mxu0 0.0
            %520 = vmatpush1.msra.mxu0 %v299
            %521 = vmatprep.subr.mxu0 0.0
            %522 = vmatpush1.msra.mxu0 %v300
            %523 = vmatprep.subr.mxu0 0.0
            %524 = vmatpush1.msra.mxu0 %v301
            %525 = vmatprep.subr.mxu0 0.0
            %526 = vmatpush1.msra.mxu0 %v302
            %527 = vmatprep.subr.mxu0 0.0
            %528 = vmatpush1.msra.mxu0 %v303
            %529 = vmatprep.subr.mxu0 0.0
            %530 = vmatpush1.msra.mxu0 %v304
            %531 = vmatprep.subr.mxu0 0.0
            %532 = vmatpush1.msra.mxu0 %v305
            %533 = vmatprep.subr.mxu0 0.0
            %534 = vmatpush1.msra.mxu0 %v306
            %535 = vmatprep.subr.mxu0 0.0
            %536 = vmatpush1.msra.mxu0 %v307
            %537 = vmatprep.subr.mxu0 0.0
            %538 = vmatpush1.msra.mxu0 %v308
            %539 = vmatprep.subr.mxu0 0.0
            %540 = vmatpush1.msra.mxu0 %v309
            %541 = vmatprep.subr.mxu0 0.0
            %542 = vmatpush1.msra.mxu0 %v310
            %543 = vmatprep.subr.mxu0 0.0
            %544 = vmatpush1.msra.mxu0 %v311
            %545 = vmatprep.subr.mxu0 0.0
            %546 = vmatpush1.msra.mxu0 %v312
            %547 = vmatprep.subr.mxu0 0.0
            %548 = vmatpush1.msra.mxu0 0.0
            %549 = vmatprep.subr.mxu0 0.0
            %550 = vmatpush1.msra.mxu0 0.0
            %551 = vmatprep.subr.mxu0 0.0
            %552 = vmatpush1.msra.mxu0 0.0
            %553 = vmatprep.subr.mxu0 0.0
            %554 = vmatpush1.msra.mxu0 0.0
            %555 = vmatprep.subr.mxu0 0.0
            %556 = vmatpush1.msra.mxu0 0.0
            %557 = vmatprep.subr.mxu0 0.0
            %558 = vmatpush1.msra.mxu0 0.0
            %559 = vmatprep.subr.mxu0 0.0
            %560 = vmatpush1.msra.mxu0 0.0
            %561 = vmatprep.subr.mxu0 0.0
            %562 = vmatpush1.msra.mxu0 0.0
            %563 = vmatprep.subr.mxu0 0.0
            %564 = vmatpush1.msra.mxu0 0.0
            %565 = vmatprep.subr.mxu0 0.0
            %566 = vmatpush1.msra.mxu0 0.0
            %567 = vmatprep.subr.mxu0 0.0
            %568 = vmatpush1.msra.mxu0 0.0
            %569 = vmatprep.subr.mxu0 0.0
            %570 = vmatpush1.msra.mxu0 0.0
            %571 = vmatprep.subr.mxu0 0.0
            %572 = vmatpush1.msra.mxu0 0.0
            %573 = vmatprep.subr.mxu0 0.0
            %574 = vmatpush1.msra.mxu0 0.0
            %575 = vmatprep.subr.mxu0 0.0
            %576 = vmatpush1.msra.mxu0 0.0
            %577 = vmatprep.subr.mxu0 0.0
            %578 = vmatpush1.msra.mxu0 0.0
            %579 = vmatprep.mubr.f32.mxu0 0.0
            %580 = vmatmul.mubr.f32.gmra.mrb[0].mxu0 %v511
            %v581 = vpop.f32.mrb[0].mxu0
            %v582 = vadd.f32 0.0, %v581
            %v583 = vpop.f32.mrb[0].mxu0
            %584 = vmatprep.mubr.f32.mxu0 0.0
            %585 = vmatmul.mubr.f32.gmra.mrb[0].mxu0 %v512
            %v586 = vpop.f32.mrb[0].mxu0
            %v587 = vadd.f32 0.0, %v586
            %v588 = vpop.f32.mrb[0].mxu0
            %589 = vmatprep.mubr.f32.mxu0 0.0
            %590 = vmatmul.mubr.f32.gmra.mrb[0].mxu0 %v513
            %v591 = vpop.f32.mrb[0].mxu0
            %v592 = vadd.f32 0.0, %v591
            %v593 = vpop.f32.mrb[0].mxu0
            %594 = vmatprep.mubr.f32.mxu0 0.0
            %595 = vmatmul.mubr.f32.gmra.mrb[0].mxu0 %v514
            %v596 = vpop.f32.mrb[0].mxu0
            %v597 = vadd.f32 0.0, %v596
            %v598 = vpop.f32.mrb[0].mxu0
            %599 = vdwg.mxu0
            %600 = vst [vmem:[#allocation2] sm:$0xff] %v582
            %601 = vst [vmem:[#allocation2 + $0x8] sm:$0xff] %v587
            %602 = vst [vmem:[#allocation2 + $0x10] sm:$0xff] %v592
            %603 = vst [vmem:[#allocation2 + $0x18] sm:$0xff] %v597
          $region68: #{tpu_custom_call.1} parent=55 // pred_fallthru
            _
        $region56: #{tpu_custom_call.1} parent=35 // pred_fallthru
          _
        %v604 = vld [vmem:[%s249] sm:$0xff]
        %v605 = vld [vmem:[#allocation2] sm:$0xff]
        %v606 = vld [vmem:[#allocation2 + $0x8] sm:$0xff]
        %v607 = vld [vmem:[#allocation2 + $0x10] sm:$0xff]
        %v608 = vld [vmem:[#allocation2 + $0x18] sm:$0xff]
        %vm609 = vcmask 261120
        %v611 = vsel %vm609, %v604, 0
        %613 = vmatprep.subr.mxu0 0.0
        %614 = vmatpush1.msra.mxu0 %v605
        %615 = vmatprep.subr.mxu0 0.0
        %616 = vmatpush1.msra.mxu0 %v606
        %617 = vmatprep.subr.mxu0 0.0
        %618 = vmatpush1.msra.mxu0 %v607
        %619 = vmatprep.subr.mxu0 0.0
        %620 = vmatpush1.msra.mxu0 %v608
        %621 = vmatprep.subr.mxu0 0.0
        %622 = vmatpush1.msra.mxu0 0.0
        %623 = vmatprep.subr.mxu0 0.0
        %624 = vmatpush1.msra.mxu0 0.0
        %625 = vmatprep.subr.mxu0 0.0
        %626 = vmatpush1.msra.mxu0 0.0
        %627 = vmatprep.subr.mxu0 0.0
        %628 = vmatpush1.msra.mxu0 0.0
        %629 = vmatprep.subr.mxu0 0.0
        %630 = vmatpush1.msra.mxu0 0.0
        %631 = vmatprep.subr.mxu0 0.0
        %632 = vmatpush1.msra.mxu0 0.0
        %633 = vmatprep.subr.mxu0 0.0
        %634 = vmatpush1.msra.mxu0 0.0
        %635 = vmatprep.subr.mxu0 0.0
        %636 = vmatpush1.msra.mxu0 0.0
        %637 = vmatprep.subr.mxu0 0.0
        %638 = vmatpush1.msra.mxu0 0.0
        %639 = vmatprep.subr.mxu0 0.0
        %640 = vmatpush1.msra.mxu0 0.0
        %641 = vmatprep.subr.mxu0 0.0
        %642 = vmatpush1.msra.mxu0 0.0
        %643 = vmatprep.subr.mxu0 0.0
        %644 = vmatpush1.msra.mxu0 0.0
        %645 = vmatprep.subr.mxu0 0.0
        %646 = vmatpush1.msra.mxu0 0.0
        %647 = vmatprep.subr.mxu0 0.0
        %648 = vmatpush1.msra.mxu0 0.0
        %649 = vmatprep.subr.mxu0 0.0
        %650 = vmatpush1.msra.mxu0 0.0
        %651 = vmatprep.subr.mxu0 0.0
        %652 = vmatpush1.msra.mxu0 0.0
        %653 = vmatprep.subr.mxu0 0.0
        %654 = vmatpush1.msra.mxu0 0.0
        %655 = vmatprep.subr.mxu0 0.0
        %656 = vmatpush1.msra.mxu0 0.0
        %657 = vmatprep.subr.mxu0 0.0
        %658 = vmatpush1.msra.mxu0 0.0
        %659 = vmatprep.subr.mxu0 0.0
        %660 = vmatpush1.msra.mxu0 0.0
        %661 = vmatprep.subr.mxu0 0.0
        %662 = vmatpush1.msra.mxu0 0.0
        %663 = vmatprep.subr.mxu0 0.0
        %664 = vmatpush1.msra.mxu0 0.0
        %665 = vmatprep.subr.mxu0 0.0
        %666 = vmatpush1.msra.mxu0 0.0
        %667 = vmatprep.subr.mxu0 0.0
        %668 = vmatpush1.msra.mxu0 0.0
        %669 = vmatprep.subr.mxu0 0.0
        %670 = vmatpush1.msra.mxu0 0.0
        %671 = vmatprep.subr.mxu0 0.0
        %672 = vmatpush1.msra.mxu0 0.0
        %673 = vmatprep.subr.mxu0 0.0
        %674 = vmatpush1.msra.mxu0 0.0
        %675 = vmatprep.subr.mxu0 0.0
        %676 = vmatpush1.msra.mxu0 0.0
        %677 = vmatprep.mubr.f32.mxu0 0.0
        %678 = vmatmul.mubr.f32.gmra.mrb[0].mxu0 %v611
        %v679 = vpop.f32.mrb[0].mxu0
        %v680 = vadd.f32 0.0, %v679
        %v681 = vpop.f32.mrb[0].mxu0
        %682 = vdwg.mxu0
        %p683 = scmp.eq.s32.totalorder %s27, 0
        // Predicated region
        $region69: #{tpu_custom_call.1} parent=35 // pred_check
          %p684 = pneg %p683
        $region70: #{tpu_custom_call.1} parent=35 // pred_check_branch
          %686 = sbr.rel (%p684) target = $region72
        $region71: #{tpu_custom_call.1} parent=35 // pred_region
          %v687 = vmax.f32 %v680, 0.0
          %s688 = scalar_lea.vmem [#allocation3], %s292
          %689 = vst [vmem:[%s688] sm:$0xff] %v687
        $region72: #{tpu_custom_call.1} parent=35 // pred_fallthru
          _
        %p690 = scmp.eq.s32.totalorder %s27, 1
        // Predicated region
        $region73: #{tpu_custom_call.1} parent=35 // pred_check
          %p691 = pneg %p690
        $region74: #{tpu_custom_call.1} parent=35 // pred_check_branch
          %693 = sbr.rel (%p691) target = $region76
        $region75: #{tpu_custom_call.1} parent=35 // pred_region
          %v694 = vmax.f32 %v680, 0.0
          %v695 = vand.u32 2147483647, %v680
          %v696 = vsub.f32 0.0, %v695
          %v697 = vmul.f32 %v696, 1.442695
          %v698 = vpow.pop %v697
          %v699 = vadd.f32 %v698, 1.0
          %v700 = vlog2.pop %v699
          %v701 = vmul.f32 %v700, 0.6931472
          %v702 = vmul.f32 -0.5, %v698
          %v703 = vadd.f32 %v702, 1.0
          %v704 = vmul.f32 %v703, %v698
          %v705 = vand.u32 2147483647, %v698
          %vm706 = vcmp.lt.f32.partialorder %v705, 0.0004427343
          %v707 = vsel %vm706, %v704, %v701
          %v708 = vadd.f32 %v694, %v707
          %v709 = vtanh.pop %v708
          %v710 = vmul.f32 %v680, %v709
          %s711 = scalar_lea.vmem [#allocation4], %s292
          %712 = vst [vmem:[%s711] sm:$0xff] %v710
        $region76: #{tpu_custom_call.1} parent=35 // pred_fallthru
          _
        %p713 = scmp.eq.s32.totalorder %s27, 2
        // Predicated region
        $region77: #{tpu_custom_call.1} parent=35 // pred_check
          %p714 = pneg %p713
        $region78: #{tpu_custom_call.1} parent=35 // pred_check_branch
          %716 = sbr.rel (%p714) target = $region80
        $region79: #{tpu_custom_call.1} parent=35 // pred_region
          %v717 = vmax.f32 %v680, 0.0
          %v718 = vand.u32 2147483647, %v680
          %v719 = vsub.f32 0.0, %v718
          %v720 = vmul.f32 %v719, 1.442695
          %v721 = vpow.pop %v720
          %v722 = vadd.f32 %v721, 1.0
          %v723 = vlog2.pop %v722
          %v724 = vmul.f32 %v723, 0.6931472
          %v725 = vmul.f32 -0.5, %v721
          %v726 = vadd.f32 %v725, 1.0
          %v727 = vmul.f32 %v726, %v721
          %v728 = vand.u32 2147483647, %v721
          %vm729 = vcmp.lt.f32.partialorder %v728, 0.0004427343
          %v730 = vsel %vm729, %v727, %v724
          %v731 = vadd.f32 %v717, %v730
          %v732 = vtanh.pop %v731
          %v733 = vmul.f32 %v680, %v732
          %v734 = vld [vmem:[#allocation11] sm:$0xff]
          %v735 = vld [vmem:[#allocation11 + $0x8] sm:$0xff]
          %v736 = vld [vmem:[#allocation11 + $0x10] sm:$0xff]
          %v737 = vld [vmem:[#allocation11 + $0x18] sm:$0xff]
          %v738 = vld [vmem:[#allocation11 + $0x20] sm:$0xff]
          %v739 = vld [vmem:[#allocation11 + $0x28] sm:$0xff]
          %v740 = vld [vmem:[#allocation11 + $0x30] sm:$0xff]
          %v741 = vld [vmem:[#allocation11 + $0x38] sm:$0xff]
          %v742 = vld [vmem:[#allocation11 + $0x40] sm:$0xff]
          %v743 = vld [vmem:[#allocation11 + $0x48] sm:$0xff]
          %v744 = vld [vmem:[#allocation11 + $0x50] sm:$0xff]
          %v745 = vld [vmem:[#allocation11 + $0x58] sm:$0xff]
          %v746 = vld [vmem:[#allocation11 + $0x60] sm:$0xff]
          %v747 = vld [vmem:[#allocation11 + $0x68] sm:$0xff]
          %v748 = vld [vmem:[#allocation11 + $0x70] sm:$0xff]
          %v749 = vld [vmem:[#allocation11 + $0x78] sm:$0xff]
          %750 = vmatprep.subr.mxu0 0.0
          %751 = vmatpush1.msra.mxu0 %v734
          %752 = vmatprep.subr.mxu0 0.0
          %753 = vmatpush1.msra.mxu0 %v735
          %754 = vmatprep.subr.mxu0 0.0
          %755 = vmatpush1.msra.mxu0 %v736
          %756 = vmatprep.subr.mxu0 0.0
          %757 = vmatpush1.msra.mxu0 %v737
          %758 = vmatprep.subr.mxu0 0.0
          %759 = vmatpush1.msra.mxu0 %v738
          %760 = vmatprep.subr.mxu0 0.0
          %761 = vmatpush1.msra.mxu0 %v739
          %762 = vmatprep.subr.mxu0 0.0
          %763 = vmatpush1.msra.mxu0 %v740
          %764 = vmatprep.subr.mxu0 0.0
          %765 = vmatpush1.msra.mxu0 %v741
          %766 = vmatprep.subr.mxu0 0.0
          %767 = vmatpush1.msra.mxu0 %v742
          %768 = vmatprep.subr.mxu0 0.0
          %769 = vmatpush1.msra.mxu0 %v743
          %770 = vmatprep.subr.mxu0 0.0
          %771 = vmatpush1.msra.mxu0 %v744
          %772 = vmatprep.subr.mxu0 0.0
          %773 = vmatpush1.msra.mxu0 %v745
          %774 = vmatprep.subr.mxu0 0.0
          %775 = vmatpush1.msra.mxu0 %v746
          %776 = vmatprep.subr.mxu0 0.0
          %777 = vmatpush1.msra.mxu0 %v747
          %778 = vmatprep.subr.mxu0 0.0
          %779 = vmatpush1.msra.mxu0 %v748
          %780 = vmatprep.subr.mxu0 0.0
          %781 = vmatpush1.msra.mxu0 %v749
          %782 = vmatprep.subr.mxu0 0.0
          %783 = vmatpush1.msra.mxu0 0.0
          %784 = vmatprep.subr.mxu0 0.0
          %785 = vmatpush1.msra.mxu0 0.0
          %786 = vmatprep.subr.mxu0 0.0
          %787 = vmatpush1.msra.mxu0 0.0
          %788 = vmatprep.subr.mxu0 0.0
          %789 = vmatpush1.msra.mxu0 0.0
          %790 = vmatprep.subr.mxu0 0.0
          %791 = vmatpush1.msra.mxu0 0.0
          %792 = vmatprep.subr.mxu0 0.0
          %793 = vmatpush1.msra.mxu0 0.0
          %794 = vmatprep.subr.mxu0 0.0
          %795 = vmatpush1.msra.mxu0 0.0
          %796 = vmatprep.subr.mxu0 0.0
          %797 = vmatpush1.msra.mxu0 0.0
          %798 = vmatprep.subr.mxu0 0.0
          %799 = vmatpush1.msra.mxu0 0.0
          %800 = vmatprep.subr.mxu0 0.0
          %801 = vmatpush1.msra.mxu0 0.0
          %802 = vmatprep.subr.mxu0 0.0
          %803 = vmatpush1.msra.mxu0 0.0
          %804 = vmatprep.subr.mxu0 0.0
          %805 = vmatpush1.msra.mxu0 0.0
          %806 = vmatprep.subr.mxu0 0.0
          %807 = vmatpush1.msra.mxu0 0.0
          %808 = vmatprep.subr.mxu0 0.0
          %809 = vmatpush1.msra.mxu0 0.0
          %810 = vmatprep.subr.mxu0 0.0
          %811 = vmatpush1.msra.mxu0 0.0
          %812 = vmatprep.subr.mxu0 0.0
          %813 = vmatpush1.msra.mxu0 0.0
          %814 = vmatprep.mubr.f32.mxu0 0.0
          %815 = vmatmul.mubr.f32.gmra.mrb[0].mxu0 %v733
          %v816 = vpop.f32.mrb[0].mxu0
          %v817 = vadd.f32 0.0, %v816
          %v818 = vpop.f32.mrb[0].mxu0
          %819 = vdwg.mxu0
          %820 = vst [vmem:[%s291] sm:$0xff] %v817
        $region80: #{tpu_custom_call.1} parent=35 // pred_fallthru
          _
        %s821 = sand.u32 %s137, 1
        %s822 = scalar_lea.sflag [#allocation7], %s821
        %s823 = sand.u32 %s137, 1
        %s824 = smul.addr %s823, 8
        %s825 = scalar_lea.vmem [#allocation13], %s824
        // Predicated region
        $region81: #{tpu_custom_call.1} parent=35 // pred_check
          %p826 = pneg %p147
        $region82: #{tpu_custom_call.1} parent=35 // pred_check_branch
          %828 = sbr.rel (%p826) target = $region84
        $region83: #{tpu_custom_call.1} parent=35 // pred_region
          %s830 = ssub.s32 128, 128
          %831 = vsyncadd %s822, %s830
          %s832 = smul.addr %s28, 128
          %s833 = scalar_lea.hbm %s4, %s832
          %s835 = sshll.u32 %s825, 4
          %s836 = int_to_ptr.vmem [resolvable:$true] %s835
          %838 = dma.vmem_to_hbm [thread:$0]  %s836, 128, %s833, %s822
        $region84: #{tpu_custom_call.1} parent=35 // pred_fallthru
          _
      $region36: #{tpu_custom_call.1} parent=5 // pred_fallthru
        _
      %p839 = scmp.le.s32.totalorder 2, %s18
      // Predicated region
      $region85: #{tpu_custom_call.1} parent=5 // pred_check
        %p840 = pneg %p839
      $region86: #{tpu_custom_call.1} parent=5 // pred_check_branch
        %842 = sbr.rel (%p840) target = $region88
      $region87: #{tpu_custom_call.1} parent=5 // pred_region
        %s843 = ssub.s32 %s18, 2
        // Predicated region
        $region89: #{tpu_custom_call.1} parent=87 // pred_check
          %p844 = pneg %p153
        $region90: #{tpu_custom_call.1} parent=87 // pred_check_branch
          %846 = sbr.rel (%p844) target = $region92
        $region91: #{tpu_custom_call.1} parent=87 // pred_region
          %s847 = sand.u32 %s138, 1
          %s848 = scalar_lea.sflag [#allocation7], %s847
          %s849 = sand.u32 %s138, 1
          %s850 = smul.addr %s849, 8
          %s851 = scalar_lea.vmem [#allocation13], %s850
          %852 = dma.done %s848, 128
        $region92: #{tpu_custom_call.1} parent=87 // pred_fallthru
          _
      $region88: #{tpu_custom_call.1} parent=5 // pred_fallthru
        _
    $region6: #{tpu_custom_call.1} parent=1 // loop_footer
      %s22 = sadd.s32 1, %s18
    $region7: #{tpu_custom_call.1} parent=1 // loop_footer_branch
      %17 = sbr.rel target = $region3
    $region8: #{tpu_custom_call.1} parent=1 // loop_exit
      _
    %853 = vsyncpa [#allocation6], 1
    %s854 = scalar_lea.sflag [#allocation6], 1
    %855 = vsyncpa %s854, 1
    %856 = vsyncpa [#allocation9], 1
    %s857 = scalar_lea.sflag [#allocation9], 1
    %858 = vsyncpa %s857, 1
    %859 = vsyncpa [#allocation12], 1
    %860 = vsyncpa [#allocation7], 1
    %s861 = scalar_lea.sflag [#allocation7], 1
    %862 = vsyncpa %s861, 1

</llo_original>
